<compile_context>
chip_gen: v6e
topology: v6e:2x2x1
jax: 0.10.0
libtpu: 0.0.40
codegen_flags: <defaults>
</compile_context>

<pallas_src>
import functools

import jax
import jax.numpy as jnp
from jax.experimental import pallas as pl
from jax.experimental.pallas import tpu as pltpu

_LANES = 128
_SUBLANES = 8


def _round_up(n, m):
    return ((n + m - 1) // m) * m


# ----------------------------------------------------------------------------
# Kernel
# ----------------------------------------------------------------------------
def _make_kernel(fc1_dims, fc2_dims, matmul_dtype):
    inv_d1 = 1.0 / float(fc1_dims)
    inv_d2 = 1.0 / float(fc2_dims)

    def ln_relu(h, v_ref, inv_n):
        # v_ref rows: 0=bias, 1=gamma, 2=beta (zero on padded lanes).
        h = h + v_ref[0:1, :]
        # One-pass LayerNorm.  Padded lanes of h are exactly 0 (zero-padded
        # weight columns + zero-padded bias), so unmasked sums over the padded
        # width scaled by 1/true_width are exact.
        mean = jnp.sum(h, axis=-1, keepdims=True) * inv_n
        ex2 = jnp.sum(h * h, axis=-1, keepdims=True) * inv_n
        var = jnp.maximum(ex2 - mean * mean, 0.0)
        y = (h - mean) * jax.lax.rsqrt(var + 1e-5) * v_ref[1:2, :] + v_ref[2:3, :]
        return jnp.maximum(y, 0.0)  # padded gamma/beta == 0 -> padded lanes 0

    def kernel(x_ref, w1_ref, w2_ref, w3_ref, v1_ref, v2_ref, b3_ref, o_ref):
        x = x_ref[...].astype(matmul_dtype)                      # (TB, in)

        h1 = jnp.dot(x, w1_ref[...], preferred_element_type=jnp.float32)
        h1 = ln_relu(h1, v1_ref, inv_d1)                         # (TB, D1p) f32

        h2 = jnp.dot(h1.astype(matmul_dtype), w2_ref[...],
                     preferred_element_type=jnp.float32)
        h2 = ln_relu(h2, v2_ref, inv_d2)                         # (TB, D2p) f32

        y = jnp.dot(h2.astype(matmul_dtype), w3_ref[...],
                    preferred_element_type=jnp.float32) + b3_ref[...]
        o_ref[...] = jnp.tanh(y).astype(o_ref.dtype)             # (TB, A)

    return kernel


# ----------------------------------------------------------------------------
# Param packing (do once, reuse every forward call)
# ----------------------------------------------------------------------------
def pack_params(params, matmul_dtype=jnp.bfloat16):
    """Pad + pack the 10 PyTorch-style params into 6 kernel operands.

    INVARIANT (the kernel's unmasked LayerNorm depends on it): all padded
    weight columns / rows, padded biases, and padded gamma/beta are EXACTLY 0.

    Returns (w1p, w2p, w3p, v1, v2, b3p):
      w1p: (in_feats, D1p) matmul_dtype      D1p = round_up(fc1_dims, 128)
      w2p: (D1p, D2p)      matmul_dtype      D2p = round_up(fc2_dims, 128)
      w3p: (D2p, n_actions) matmul_dtype
      v1 : (3, D1p) f32  rows: bias1, gamma1, beta1
      v2 : (3, D2p) f32  rows: bias2, gamma2, beta2
      b3p: (1, n_actions) f32
    """
    (w1, b1, g1, be1, w2, b2, g2, be2, w3, b3) = params
    in_feats, fc1_dims = w1.shape
    fc2_dims = w2.shape[1]
    n_actions = w3.shape[1]
    d1p = _round_up(fc1_dims, _LANES)
    d2p = _round_up(fc2_dims, _LANES)

    def pad_w(w, rows, cols):
        w = jnp.asarray(w, jnp.float32)
        w = jnp.pad(w, ((0, rows - w.shape[0]), (0, cols - w.shape[1])))
        return w.astype(matmul_dtype)

    def vec_slab(rows, width):
        padded = [jnp.pad(jnp.asarray(r, jnp.float32).reshape(-1),
                          (0, width - r.size)) for r in rows]
        return jnp.stack(padded)

    w1p = pad_w(w1, in_feats, d1p)
    w2p = pad_w(w2, d1p, d2p)
    w3p = pad_w(w3, d2p, n_actions)
    v1 = vec_slab([b1, g1, be1], d1p)
    v2 = vec_slab([b2, g2, be2], d2p)
    b3p = jnp.asarray(b3, jnp.float32).reshape(1, n_actions)
    return (w1p, w2p, w3p, v1, v2, b3p)


# ----------------------------------------------------------------------------
# Forward wrapper
# ----------------------------------------------------------------------------
@functools.partial(jax.jit,
                   static_argnames=("fc1_dims", "fc2_dims", "block_batch"))
def ddpg_actor_forward(x, packed, *, fc1_dims, fc2_dims, block_batch=1024):
    """Fused actor forward: returns (batch, n_actions) f32 actions in [-1, 1]."""
    w1p, w2p, w3p, v1, v2, b3p = packed
    batch, in_feats = x.shape
    d1p = w1p.shape[1]
    d2p = w2p.shape[1]
    n_actions = w3p.shape[1]
    matmul_dtype = w1p.dtype

    # Batch tiling: >=2 blocks whenever batch > 8 (so the "parallel" axis can
    # shard across v7x's two TensorCores), tile a multiple of 8 sublanes, and
    # padding of at most (num_blocks * 8) rows.
    batch_r8 = _round_up(batch, _SUBLANES)
    if batch_r8 <= _SUBLANES:
        nb = 1
    else:
        nb = max(2, pl.cdiv(batch_r8, block_batch))
    tb = _round_up(pl.cdiv(batch_r8, nb), _SUBLANES)
    padded_batch = nb * tb

    x = x.astype(jnp.float32)
    if padded_batch != batch:           # no-op on the batch<=8 rollout path
        x = jnp.pad(x, ((0, padded_batch - batch), (0, 0)))

    out = pl.pallas_call(
        _make_kernel(fc1_dims, fc2_dims, matmul_dtype),
        out_shape=jax.ShapeDtypeStruct((padded_batch, n_actions), jnp.float32),
        grid=(nb,),
        in_specs=[
            # Activations: only the batch axis is tiled; natural feature width.
            pl.BlockSpec((tb, in_feats), lambda i: (i, 0)),
            # Weights / vectors: constant block index -> VMEM-resident across
            # grid steps (Pallas skips re-copy when the block doesn't change).
            pl.BlockSpec((in_feats, d1p), lambda i: (0, 0)),
            pl.BlockSpec((d1p, d2p), lambda i: (0, 0)),
            pl.BlockSpec((d2p, n_actions), lambda i: (0, 0)),
            pl.BlockSpec((3, d1p), lambda i: (0, 0)),
            pl.BlockSpec((3, d2p), lambda i: (0, 0)),
            pl.BlockSpec((1, n_actions), lambda i: (0, 0)),
        ],
        out_specs=pl.BlockSpec((tb, n_actions), lambda i: (i, 0)),
        compiler_params=pltpu.CompilerParams(
            dimension_semantics=("parallel",)),
    )(x, w1p, w2p, w3p, v1, v2, b3p)

    if padded_batch != batch:
        out = out[:batch]
    return out


# ----------------------------------------------------------------------------
# Reference / init (pure JAX, mirrors the PyTorch module)
# ----------------------------------------------------------------------------
def init_params(key, input_size, fc1_dims, fc2_dims, n_actions):
    """Synthetic init mirroring the PyTorch module's shapes.

    fc1/fc2: uniform(-1/sqrt(fan_in), 1/sqrt(fan_in)); mu: uniform(-0.003, 0.003).
    LayerNorm: gamma=1, beta=0. Weights stored (in, out) for x @ W.
    """
    ks = jax.random.split(key, 6)

    def lin(kw, kb, fan_in, fan_out, bound):
        w = jax.random.uniform(kw, (fan_in, fan_out), jnp.float32, -bound, bound)
        b = jax.random.uniform(kb, (1, fan_out), jnp.float32, -bound, bound)
        return w, b

    w1, b1 = lin(ks[0], ks[1], input_size, fc1_dims, input_size ** -0.5)
    w2, b2 = lin(ks[2], ks[3], fc1_dims, fc2_dims, fc1_dims ** -0.5)
    w3, b3 = lin(ks[4], ks[5], fc2_dims, n_actions, 0.003)

    g1 = jnp.ones((1, fc1_dims), jnp.float32)
    be1 = jnp.zeros((1, fc1_dims), jnp.float32)
    g2 = jnp.ones((1, fc2_dims), jnp.float32)
    be2 = jnp.zeros((1, fc2_dims), jnp.float32)
    return (w1, b1, g1, be1, w2, b2, g2, be2, w3, b3)


def _layernorm(h, gamma, beta, eps=1e-5):
    mean = jnp.mean(h, axis=-1, keepdims=True)
    var = jnp.mean(jnp.square(h - mean), axis=-1, keepdims=True)
    return (h - mean) * jax.lax.rsqrt(var + eps) * gamma + beta


def reference_forward(x, params, matmul_dtype=jnp.float32):
    """Pure-JAX reference; matmul_dtype selects the operand precision."""
    (w1, b1, g1, be1, w2, b2, g2, be2, w3, b3) = params

    def mm(a, w):
        return jnp.dot(a.astype(matmul_dtype), w.astype(matmul_dtype),
                       preferred_element_type=jnp.float32)

    h1 = jnp.maximum(_layernorm(mm(x, w1) + b1, g1, be1), 0.0)
    h2 = jnp.maximum(_layernorm(mm(h1, w2) + b2, g2, be2), 0.0)
    return jnp.tanh(mm(h2, w3) + b3)


# ----------------------------------------------------------------------------
# Self-test
# ----------------------------------------------------------------------------
if __name__ == "__main__":
    def run_case(batch, input_size, fc1_dims, fc2_dims, n_actions, key):
        kx, kp = jax.random.split(key)
        x = jax.random.normal(kx, (batch, input_size), jnp.float32)
        params = init_params(kp, input_size, fc1_dims, fc2_dims, n_actions)
        packed = pack_params(params, matmul_dtype=jnp.bfloat16)

        out = ddpg_actor_forward(x, packed, fc1_dims=fc1_dims,
                                 fc2_dims=fc2_dims)
        out = jax.block_until_ready(out)
        assert out.shape == (batch, n_actions)

        # Check against a reference using the SAME bf16-operand /
        # f32-accumulate matmuls the kernel runs on the MXU.
        ref_m = reference_forward(x, params, matmul_dtype=jnp.bfloat16)
        err_m = float(jnp.max(jnp.abs(out - ref_m)))
        assert jnp.allclose(out, ref_m, atol=1e-4, rtol=1e-4), err_m

        # Loose check against full-f32 PyTorch-style math (bf16 weight
        # rounding only slightly perturbs the small tanh-bounded outputs).
        ref_f = reference_forward(x, params, matmul_dtype=jnp.float32)
        err_f = float(jnp.max(jnp.abs(out - ref_f)))
        assert jnp.allclose(out, ref_f, atol=5e-3), err_f

    key = jax.random.PRNGKey(0)
    k1, k2 = jax.random.split(key)

    # Small RL-rollout shape: no pad, no slice, single grid step.
    run_case(batch=8, input_size=32, fc1_dims=64, fc2_dims=48,
             n_actions=4, key=k1)
    # Module-default hidden_dim=(400, 300); non-divisible batch exercises
    # row padding, the output row-slice, and >=2 grid blocks (v7x megacore).
    run_case(batch=20, input_size=32, fc1_dims=400, fc2_dims=300,
             n_actions=4, key=k2)

    print("KERNEL_OK")
</pallas_src>

<mosaic_0001>
module attributes {stable_mosaic.version = 11 : i64} {
  func.func @kernel(%arg0: i32, %arg1: memref<8x32xf32, #tpu.memory_space<vmem>>, %arg2: memref<32x128xbf16, #tpu.memory_space<vmem>>, %arg3: memref<128x128xbf16, #tpu.memory_space<vmem>>, %arg4: memref<128x4xbf16, #tpu.memory_space<vmem>>, %arg5: memref<3x128xf32, #tpu.memory_space<vmem>>, %arg6: memref<3x128xf32, #tpu.memory_space<vmem>>, %arg7: memref<1x4xf32, #tpu.memory_space<vmem>>, %arg8: memref<8x4xf32, #tpu.memory_space<vmem>>) attributes {dimension_semantics = [#tpu.dimension_semantics<parallel>], iteration_bounds = array<i64: 1>, scalar_prefetch = 0 : i64, scratch_operands = 0 : i64, tpu.core_type = #tpu.core_type<tc>, window_params = [{transform_indices = @transform_0, window_bounds = array<i64: 8, 32>}, {pipeline_mode = #tpu.pipeline_mode<synchronous>, transform_indices = @transform_1, window_bounds = array<i64: 32, 128>}, {pipeline_mode = #tpu.pipeline_mode<synchronous>, transform_indices = @transform_2, window_bounds = array<i64: 128, 128>}, {pipeline_mode = #tpu.pipeline_mode<synchronous>, transform_indices = @transform_3, window_bounds = array<i64: 128, 4>}, {pipeline_mode = #tpu.pipeline_mode<synchronous>, transform_indices = @transform_4, window_bounds = array<i64: 3, 128>}, {pipeline_mode = #tpu.pipeline_mode<synchronous>, transform_indices = @transform_5, window_bounds = array<i64: 3, 128>}, {pipeline_mode = #tpu.pipeline_mode<synchronous>, transform_indices = @transform_6, window_bounds = array<i64: 1, 4>}, {transform_indices = @transform_7, window_bounds = array<i64: 8, 4>}]} {
    %c0 = arith.constant 0 : index
    %c0_0 = arith.constant 0 : index
    %0 = vector.load %arg1[%c0, %c0_0] : memref<8x32xf32, #tpu.memory_space<vmem>>, vector<8x32xf32>
    %1 = arith.truncf %0 : vector<8x32xf32> to vector<8x32xbf16>
    %c0_1 = arith.constant 0 : index
    %c0_2 = arith.constant 0 : index
    %2 = vector.load %arg2[%c0_1, %c0_2] : memref<32x128xbf16, #tpu.memory_space<vmem>>, vector<32x128xbf16>
    %cst = arith.constant dense<0.000000e+00> : vector<8x128xf32>
    %3 = tpu.matmul %1, %2, %cst {dimension_numbers = #tpu.dot_dimension_numbers<[1], [0], [0], [1], [0, 0, 1, 1], [], []>} : vector<8x32xbf16>, vector<32x128xbf16>, vector<8x128xf32> -> vector<8x128xf32>
    %c0_3 = arith.constant 0 : index
    %c0_4 = arith.constant 0 : index
    %4 = vector.load %arg5[%c0_3, %c0_4] : memref<3x128xf32, #tpu.memory_space<vmem>>, vector<1x128xf32>
    %5 = vector.broadcast %4 : vector<1x128xf32> to vector<8x128xf32>
    %6 = arith.addf %3, %5 : vector<8x128xf32>
    %cst_5 = arith.constant dense<0.000000e+00> : vector<8xf32>
    %7 = vector.multi_reduction <add>, %6, %cst_5 [1] : vector<8x128xf32> to vector<8xf32>
    %8 = vector.shape_cast %7 : vector<8xf32> to vector<8x1xf32>
    %cst_6 = arith.constant 1.562500e-02 : f32
    %9 = vector.broadcast %cst_6 : f32 to vector<8x1xf32>
    %10 = arith.mulf %8, %9 : vector<8x1xf32>
    %11 = arith.mulf %6, %6 : vector<8x128xf32>
    %cst_7 = arith.constant dense<0.000000e+00> : vector<8xf32>
    %12 = vector.multi_reduction <add>, %11, %cst_7 [1] : vector<8x128xf32> to vector<8xf32>
    %13 = vector.shape_cast %12 : vector<8xf32> to vector<8x1xf32>
    %cst_8 = arith.constant 1.562500e-02 : f32
    %14 = vector.broadcast %cst_8 : f32 to vector<8x1xf32>
    %15 = arith.mulf %13, %14 : vector<8x1xf32>
    %16 = arith.mulf %10, %10 : vector<8x1xf32>
    %17 = arith.subf %15, %16 : vector<8x1xf32>
    %cst_9 = arith.constant 0.000000e+00 : f32
    %18 = vector.broadcast %cst_9 : f32 to vector<8x1xf32>
    %19 = arith.maximumf %17, %18 : vector<8x1xf32>
    %20 = vector.broadcast %10 : vector<8x1xf32> to vector<8x128xf32>
    %21 = arith.subf %6, %20 : vector<8x128xf32>
    %cst_10 = arith.constant 9.99999974E-6 : f32
    %22 = vector.broadcast %cst_10 : f32 to vector<8x1xf32>
    %23 = arith.addf %19, %22 : vector<8x1xf32>
    %24 = math.rsqrt %23 : vector<8x1xf32>
    %25 = vector.broadcast %24 : vector<8x1xf32> to vector<8x128xf32>
    %26 = arith.mulf %21, %25 : vector<8x128xf32>
    %c1 = arith.constant 1 : index
    %c0_11 = arith.constant 0 : index
    %27 = vector.load %arg5[%c1, %c0_11] : memref<3x128xf32, #tpu.memory_space<vmem>>, vector<1x128xf32>
    %28 = vector.broadcast %27 : vector<1x128xf32> to vector<8x128xf32>
    %29 = arith.mulf %26, %28 : vector<8x128xf32>
    %c2 = arith.constant 2 : index
    %c0_12 = arith.constant 0 : index
    %30 = vector.load %arg5[%c2, %c0_12] : memref<3x128xf32, #tpu.memory_space<vmem>>, vector<1x128xf32>
    %31 = vector.broadcast %30 : vector<1x128xf32> to vector<8x128xf32>
    %32 = arith.addf %29, %31 : vector<8x128xf32>
    %cst_13 = arith.constant 0.000000e+00 : f32
    %33 = vector.broadcast %cst_13 : f32 to vector<8x128xf32>
    %34 = arith.maximumf %32, %33 : vector<8x128xf32>
    %35 = arith.truncf %34 : vector<8x128xf32> to vector<8x128xbf16>
    %c0_14 = arith.constant 0 : index
    %c0_15 = arith.constant 0 : index
    %36 = vector.load %arg3[%c0_14, %c0_15] : memref<128x128xbf16, #tpu.memory_space<vmem>>, vector<128x128xbf16>
    %cst_16 = arith.constant dense<0.000000e+00> : vector<8x128xf32>
    %37 = tpu.matmul %35, %36, %cst_16 {dimension_numbers = #tpu.dot_dimension_numbers<[1], [0], [0], [1], [0, 0, 1, 1], [], []>} : vector<8x128xbf16>, vector<128x128xbf16>, vector<8x128xf32> -> vector<8x128xf32>
    %c0_17 = arith.constant 0 : index
    %c0_18 = arith.constant 0 : index
    %38 = vector.load %arg6[%c0_17, %c0_18] : memref<3x128xf32, #tpu.memory_space<vmem>>, vector<1x128xf32>
    %39 = vector.broadcast %38 : vector<1x128xf32> to vector<8x128xf32>
    %40 = arith.addf %37, %39 : vector<8x128xf32>
    %cst_19 = arith.constant dense<0.000000e+00> : vector<8xf32>
    %41 = vector.multi_reduction <add>, %40, %cst_19 [1] : vector<8x128xf32> to vector<8xf32>
    %42 = vector.shape_cast %41 : vector<8xf32> to vector<8x1xf32>
    %cst_20 = arith.constant 0.020833334 : f32
    %43 = vector.broadcast %cst_20 : f32 to vector<8x1xf32>
    %44 = arith.mulf %42, %43 : vector<8x1xf32>
    %45 = arith.mulf %40, %40 : vector<8x128xf32>
    %cst_21 = arith.constant dense<0.000000e+00> : vector<8xf32>
    %46 = vector.multi_reduction <add>, %45, %cst_21 [1] : vector<8x128xf32> to vector<8xf32>
    %47 = vector.shape_cast %46 : vector<8xf32> to vector<8x1xf32>
    %cst_22 = arith.constant 0.020833334 : f32
    %48 = vector.broadcast %cst_22 : f32 to vector<8x1xf32>
    %49 = arith.mulf %47, %48 : vector<8x1xf32>
    %50 = arith.mulf %44, %44 : vector<8x1xf32>
    %51 = arith.subf %49, %50 : vector<8x1xf32>
    %cst_23 = arith.constant 0.000000e+00 : f32
    %52 = vector.broadcast %cst_23 : f32 to vector<8x1xf32>
    %53 = arith.maximumf %51, %52 : vector<8x1xf32>
    %54 = vector.broadcast %44 : vector<8x1xf32> to vector<8x128xf32>
    %55 = arith.subf %40, %54 : vector<8x128xf32>
    %cst_24 = arith.constant 9.99999974E-6 : f32
    %56 = vector.broadcast %cst_24 : f32 to vector<8x1xf32>
    %57 = arith.addf %53, %56 : vector<8x1xf32>
    %58 = math.rsqrt %57 : vector<8x1xf32>
    %59 = vector.broadcast %58 : vector<8x1xf32> to vector<8x128xf32>
    %60 = arith.mulf %55, %59 : vector<8x128xf32>
    %c1_25 = arith.constant 1 : index
    %c0_26 = arith.constant 0 : index
    %61 = vector.load %arg6[%c1_25, %c0_26] : memref<3x128xf32, #tpu.memory_space<vmem>>, vector<1x128xf32>
    %62 = vector.broadcast %61 : vector<1x128xf32> to vector<8x128xf32>
    %63 = arith.mulf %60, %62 : vector<8x128xf32>
    %c2_27 = arith.constant 2 : index
    %c0_28 = arith.constant 0 : index
    %64 = vector.load %arg6[%c2_27, %c0_28] : memref<3x128xf32, #tpu.memory_space<vmem>>, vector<1x128xf32>
    %65 = vector.broadcast %64 : vector<1x128xf32> to vector<8x128xf32>
    %66 = arith.addf %63, %65 : vector<8x128xf32>
    %cst_29 = arith.constant 0.000000e+00 : f32
    %67 = vector.broadcast %cst_29 : f32 to vector<8x128xf32>
    %68 = arith.maximumf %66, %67 : vector<8x128xf32>
    %69 = arith.truncf %68 : vector<8x128xf32> to vector<8x128xbf16>
    %c0_30 = arith.constant 0 : index
    %c0_31 = arith.constant 0 : index
    %70 = vector.load %arg4[%c0_30, %c0_31] : memref<128x4xbf16, #tpu.memory_space<vmem>>, vector<128x4xbf16>
    %cst_32 = arith.constant dense<0.000000e+00> : vector<8x4xf32>
    %71 = tpu.matmul %69, %70, %cst_32 {dimension_numbers = #tpu.dot_dimension_numbers<[1], [0], [0], [1], [0, 0, 1, 1], [], []>} : vector<8x128xbf16>, vector<128x4xbf16>, vector<8x4xf32> -> vector<8x4xf32>
    %c0_33 = arith.constant 0 : index
    %c0_34 = arith.constant 0 : index
    %72 = vector.load %arg7[%c0_33, %c0_34] : memref<1x4xf32, #tpu.memory_space<vmem>>, vector<1x4xf32>
    %73 = vector.broadcast %72 : vector<1x4xf32> to vector<8x4xf32>
    %74 = arith.addf %71, %73 : vector<8x4xf32>
    %75 = math.tanh %74 : vector<8x4xf32>
    %c0_35 = arith.constant 0 : index
    %c0_36 = arith.constant 0 : index
    %76 = vector.load %arg8[%c0_35, %c0_36] : memref<8x4xf32, #tpu.memory_space<vmem>>, vector<8x4xf32>
    tpu.vector_store %arg8[%c0_35, %c0_36], %75 {strides = array<i32>} : memref<8x4xf32, #tpu.memory_space<vmem>>, vector<8x4xf32>,
    return
  }
  func.func @transform_0(%arg0: i32) -> (i32, i32) {
    %c0_i32 = arith.constant 0 : i32
    %c0_i32_0 = arith.constant 0 : i32
    return %arg0, %c0_i32 : i32, i32
  }
  func.func @transform_1(%arg0: i32) -> (i32, i32) {
    %c0_i32 = arith.constant 0 : i32
    %c0_i32_0 = arith.constant 0 : i32
    %c0_i32_1 = arith.constant 0 : i32
    return %c0_i32, %c0_i32_0 : i32, i32
  }
  func.func @transform_2(%arg0: i32) -> (i32, i32) {
    %c0_i32 = arith.constant 0 : i32
    %c0_i32_0 = arith.constant 0 : i32
    %c0_i32_1 = arith.constant 0 : i32
    return %c0_i32, %c0_i32_0 : i32, i32
  }
  func.func @transform_3(%arg0: i32) -> (i32, i32) {
    %c0_i32 = arith.constant 0 : i32
    %c0_i32_0 = arith.constant 0 : i32
    %c0_i32_1 = arith.constant 0 : i32
    return %c0_i32, %c0_i32_0 : i32, i32
  }
  func.func @transform_4(%arg0: i32) -> (i32, i32) {
    %c0_i32 = arith.constant 0 : i32
    %c0_i32_0 = arith.constant 0 : i32
    %c0_i32_1 = arith.constant 0 : i32
    return %c0_i32, %c0_i32_0 : i32, i32
  }
  func.func @transform_5(%arg0: i32) -> (i32, i32) {
    %c0_i32 = arith.constant 0 : i32
    %c0_i32_0 = arith.constant 0 : i32
    %c0_i32_1 = arith.constant 0 : i32
    return %c0_i32, %c0_i32_0 : i32, i32
  }
  func.func @transform_6(%arg0: i32) -> (i32, i32) {
    %c0_i32 = arith.constant 0 : i32
    %c0_i32_0 = arith.constant 0 : i32
    %c0_i32_1 = arith.constant 0 : i32
    return %c0_i32, %c0_i32_0 : i32, i32
  }
  func.func @transform_7(%arg0: i32) -> (i32, i32) {
    %c0_i32 = arith.constant 0 : i32
    %c0_i32_0 = arith.constant 0 : i32
    return %arg0, %c0_i32 : i32, i32
  }
}

</mosaic_0001>

<llo_original>
// kernel: ddpg_actor_forward.1
$region0: #{ddpg_actor_forward.1}
  #allocation0 [shape = 'u32[]', space=smem, size = 0x4, offset = 0x4, fixed_abs, tag = 'smem constant byte address 0x4 - core index']
  #allocation1 [shape = 'u32[144,128]{1,0:T(1,128)}', space=vmem, size = 0x12000, scoped, tag = 'internal scratch']
  %s0 = inlined_call_operand.hbm [shape: f32[8,32], index: 0, kind: input, shape index: {}]
  %s1 = inlined_call_operand.hbm [shape: bf16[32,128], index: 1, kind: input, shape index: {}]
  %s2 = inlined_call_operand.vmem [shape: bf16[128,128], index: 2, kind: input, shape index: {}]
  %s3 = inlined_call_operand.vmem [shape: bf16[128,4], index: 3, kind: input, shape index: {}]
  %s4 = inlined_call_operand.vmem [shape: f32[3,128], index: 4, kind: input, shape index: {}]
  %s5 = inlined_call_operand.vmem [shape: f32[3,128], index: 5, kind: input, shape index: {}]
  %s6 = inlined_call_operand.vmem [shape: f32[1,4], index: 6, kind: input, shape index: {}]
  %s7 = inlined_call_operand.vmem [shape: f32[8,4], index: 7, kind: output, shape index: {}]
  %s8 = sld [smem:[#allocation0]]
  $region46: #{ddpg_actor_forward.1} parent=0
    _
  %s10 = ssub.s32 1, %s8
  %s11 = scalar_select 0, %s10, %s8
  $region1: #{ddpg_actor_forward.1} parent=0
    #allocation2 [shape = 'u8[4096]{0}', space=vmem, size = 0x1000, scoped, tag = 'input window, operand 0, single buffered']
    #allocation3 [shape = 's32[1]{0}', space=sflag, size = 0x4, scoped, tag = 'scoped memory for ddpg_actor_forward.1']
    #allocation4 [shape = 'u8[8192]{0}', space=vmem, size = 0x2000, scoped, tag = 'input window, operand 1, single buffered']
    #allocation5 [shape = 's32[1]{0}', space=sflag, size = 0x4, scoped, tag = 'scoped memory for ddpg_actor_forward.1']
    %12 = vsyncpa [#allocation3], 0
    %13 = vsyncpa [#allocation5], 0
    // Predicated region
    $region2: #{ddpg_actor_forward.1} parent=1 // pred_check
      _
    $region3: #{ddpg_actor_forward.1} parent=1 // pred_check_branch
      %15 = sbr.rel (0) target = $region5
    $region4: #{ddpg_actor_forward.1} parent=1 // pred_region
      %s17 = ssub.s32 128, 128
      %18 = vsyncadd [#allocation3], %s17
      %s20 = sshll.u32 [#allocation2], 4
      %s21 = int_to_ptr.vmem [resolvable:$true] %s20
      %23 = dma.hbm_to_vmem [thread:$0]  %s0, 128, %s21, [#allocation3]
    $region5: #{ddpg_actor_forward.1} parent=1 // pred_fallthru
      _
    // Predicated region
    $region6: #{ddpg_actor_forward.1} parent=1 // pred_check
      _
    $region7: #{ddpg_actor_forward.1} parent=1 // pred_check_branch
      %25 = sbr.rel (0) target = $region9
    $region8: #{ddpg_actor_forward.1} parent=1 // pred_region
      %s27 = ssub.s32 256, 256
      %28 = vsyncadd [#allocation5], %s27
      %s29 = sshll.u32 [#allocation4], 4
      %s30 = int_to_ptr.vmem [resolvable:$true] %s29
      %35 = dma.hbm_to_vmem [thread:$0]  %s1, 256, %s30, [#allocation5], 64, 64, 4
    $region9: #{ddpg_actor_forward.1} parent=1 // pred_fallthru
      _
    // Predicated region
    $region10: #{ddpg_actor_forward.1} parent=1 // pred_check
      _
    $region11: #{ddpg_actor_forward.1} parent=1 // pred_check_branch
      %37 = sbr.rel (0) target = $region13
    $region12: #{ddpg_actor_forward.1} parent=1 // pred_region
      _
    $region13: #{ddpg_actor_forward.1} parent=1 // pred_fallthru
      _
    // Predicated region
    $region14: #{ddpg_actor_forward.1} parent=1 // pred_check
      _
    $region15: #{ddpg_actor_forward.1} parent=1 // pred_check_branch
      %39 = sbr.rel (0) target = $region17
    $region16: #{ddpg_actor_forward.1} parent=1 // pred_region
      _
    $region17: #{ddpg_actor_forward.1} parent=1 // pred_fallthru
      _
    // Predicated region
    $region18: #{ddpg_actor_forward.1} parent=1 // pred_check
      _
    $region19: #{ddpg_actor_forward.1} parent=1 // pred_check_branch
      %41 = sbr.rel (0) target = $region21
    $region20: #{ddpg_actor_forward.1} parent=1 // pred_region
      _
    $region21: #{ddpg_actor_forward.1} parent=1 // pred_fallthru
      _
    // Predicated region
    $region22: #{ddpg_actor_forward.1} parent=1 // pred_check
      _
    $region23: #{ddpg_actor_forward.1} parent=1 // pred_check_branch
      %43 = sbr.rel (0) target = $region25
    $region24: #{ddpg_actor_forward.1} parent=1 // pred_region
      _
    $region25: #{ddpg_actor_forward.1} parent=1 // pred_fallthru
      _
    // Predicated region
    $region26: #{ddpg_actor_forward.1} parent=1 // pred_check
      _
    $region27: #{ddpg_actor_forward.1} parent=1 // pred_check_branch
      %45 = sbr.rel (0) target = $region29
    $region28: #{ddpg_actor_forward.1} parent=1 // pred_region
      _
    $region29: #{ddpg_actor_forward.1} parent=1 // pred_fallthru
      _
    // Predicated region
    $region30: #{ddpg_actor_forward.1} parent=1 // pred_check
      _
    $region31: #{ddpg_actor_forward.1} parent=1 // pred_check_branch
      %47 = sbr.rel (0) target = $region33
    $region32: #{ddpg_actor_forward.1} parent=1 // pred_region
      %48 = dma.done [#allocation3], 128
    $region33: #{ddpg_actor_forward.1} parent=1 // pred_fallthru
      _
    // Predicated region
    $region34: #{ddpg_actor_forward.1} parent=1 // pred_check
      _
    $region35: #{ddpg_actor_forward.1} parent=1 // pred_check_branch
      %50 = sbr.rel (0) target = $region37
    $region36: #{ddpg_actor_forward.1} parent=1 // pred_region
      %51 = dma.done [#allocation5], 256
    $region37: #{ddpg_actor_forward.1} parent=1 // pred_fallthru
      _
    %v53 = vld [vmem:[#allocation2] sm:$0xff]
    %v54 = vpack.c.bf16 %v53, %v53
    %v55 = vld [vmem:[#allocation4] sm:$0xf]
    %v56 = vld [vmem:[#allocation4 + $0x4] sm:$0xf]
    %v57 = vld [vmem:[#allocation4 + $0x8] sm:$0xf]
    %v58 = vld [vmem:[#allocation4 + $0xc] sm:$0xf]
    %v59 = vld [vmem:[%s4] sm:$0x1]
    %v60 = vlaneseq
    %v61 = vshrl.u32 %v60, 7
    %v62 = vsub.s32 0, %v61
    %v63 = vrot.slane %v59, %v62
    %v68 = vunpack.c.l.b16 %v55
    %v69 = vunpack.c.l.b16 %v56
    %v70 = vunpack.c.l.b16 %v57
    %v71 = vunpack.c.l.b16 %v58
    %v72 = vpack.c.b16 %v69, %v68
    %v73 = vpack.c.b16 %v71, %v70
    %vm76 = vcmask 261120
    %v78 = vsel %vm76, %v54, 0
    %80 = vmatprep.subr.bf16.mxu0 0
    %81 = vmatpush1.bf16.msra.mxu0 0
    %82 = vmatprep.subr.bf16.mxu0 0
    %83 = vmatpush1.bf16.msra.mxu0 0
    %84 = vmatprep.subr.bf16.mxu0 0
    %85 = vmatpush1.bf16.msra.mxu0 0
    %86 = vmatprep.subr.bf16.mxu0 0
    %87 = vmatpush1.bf16.msra.mxu0 0
    %88 = vmatprep.subr.bf16.mxu0 0
    %89 = vmatpush1.bf16.msra.mxu0 0
    %90 = vmatprep.subr.bf16.mxu0 0
    %91 = vmatpush1.bf16.msra.mxu0 0
    %92 = vmatprep.subr.bf16.mxu0 0
    %93 = vmatpush1.bf16.msra.mxu0 %v73
    %94 = vmatprep.subr.bf16.mxu0 0
    %95 = vmatpush1.bf16.msra.mxu0 %v72
    %96 = vmatprep.subr.bf16.mxu0 0
    %97 = vmatpush2.bf16.msra.mxu0 0
    %98 = vmatprep.subr.bf16.mxu0 0
    %99 = vmatpush2.bf16.msra.mxu0 0
    %100 = vmatprep.subr.bf16.mxu0 0
    %101 = vmatpush2.bf16.msra.mxu0 0
    %102 = vmatprep.subr.bf16.mxu0 0
    %103 = vmatpush2.bf16.msra.mxu0 0
    %104 = vmatprep.subr.bf16.mxu0 0
    %105 = vmatpush2.bf16.msra.mxu0 0
    %106 = vmatprep.subr.bf16.mxu0 0
    %107 = vmatpush2.bf16.msra.mxu0 0
    %108 = vmatprep.subr.bf16.mxu0 0
    %109 = vmatpush2.bf16.msra.mxu0 0
    %110 = vmatprep.subr.bf16.mxu0 0
    %111 = vmatpush2.bf16.msra.mxu0 0
    %112 = vmatprep.mubr.bf16.mxu0 0
    %113 = vmatmul.mubr.bf16.gmra.mxu0 %v78
    %v114 = vpop.f32.mrf.mxu0
    %v115 = vadd.f32 %v63, %v114
    %v116 = vpop.f32.mrf.mxu0
    %v117 = vpop.f32.mrf.mxu0
    %v118 = vpop.f32.mrf.mxu0
    %119 = vdwg.mxu0
    %120 = vadd.xlane.f32.xlu0 %v115
    %v121 = vpop.xlane.xlu0 %120
    %v122 = vmul.f32 %v121, 0.015625
    %v123 = vmul.f32 %v115, %v115
    %124 = vadd.xlane.f32.xlu0 %v123
    %v125 = vpop.xlane.xlu0 %124
    %v126 = vmul.f32 %v125, 0.015625
    %v127 = vmul.f32 %v122, %v122
    %v128 = vsub.f32 %v126, %v127
    %v129 = vmax.f32 %v128, 0.0
    %v130 = vsub.f32 %v115, %v122
    %v131 = vadd.f32 %v129, 1e-05
    %v132 = vrsqrt.pop %v131
    %v133 = vmul.f32 %v130, %v132
    %v134 = vld [vmem:[%s4 + $0x1] sm:$0x1]
    %v135 = vlaneseq
    %v136 = vshrl.u32 %v135, 7
    %v137 = vsub.s32 0, %v136
    %v138 = vrot.slane %v134, %v137
    %v139 = vmul.f32 %v133, %v138
    %v140 = vld [vmem:[%s4 + $0x2] sm:$0x1]
    %v141 = vlaneseq
    %v142 = vshrl.u32 %v141, 7
    %v143 = vsub.s32 0, %v142
    %v144 = vrot.slane %v140, %v143
    %v145 = vadd.f32 %v139, %v144
    %v146 = vmax.f32 %v145, 0.0
    %v147 = vpack.c.bf16 %v146, %v146
    %v148 = vld [vmem:[%s2] sm:$0xf]
    %v149 = vld [vmem:[%s2 + $0x4] sm:$0xf]
    %v150 = vld [vmem:[%s2 + $0x8] sm:$0xf]
    %v151 = vld [vmem:[%s2 + $0xc] sm:$0xf]
    %v152 = vld [vmem:[%s2 + $0x10] sm:$0xf]
    %v153 = vld [vmem:[%s2 + $0x14] sm:$0xf]
    %v154 = vld [vmem:[%s2 + $0x18] sm:$0xf]
    %v155 = vld [vmem:[%s2 + $0x1c] sm:$0xf]
    %v156 = vld [vmem:[%s2 + $0x20] sm:$0xf]
    %v157 = vld [vmem:[%s2 + $0x24] sm:$0xf]
    %v158 = vld [vmem:[%s2 + $0x28] sm:$0xf]
    %v159 = vld [vmem:[%s2 + $0x2c] sm:$0xf]
    %v160 = vld [vmem:[%s2 + $0x30] sm:$0xf]
    %v161 = vld [vmem:[%s2 + $0x34] sm:$0xf]
    %v162 = vld [vmem:[%s2 + $0x38] sm:$0xf]
    %v163 = vld [vmem:[%s2 + $0x3c] sm:$0xf]
    %v164 = vld [vmem:[%s5] sm:$0x1]
    %v165 = vlaneseq
    %v166 = vshrl.u32 %v165, 7
    %v167 = vsub.s32 0, %v166
    %v168 = vrot.slane %v164, %v167
    %v185 = vunpack.c.l.b16 %v148
    %v186 = vunpack.c.l.b16 %v149
    %v187 = vunpack.c.l.b16 %v150
    %v188 = vunpack.c.l.b16 %v151
    %v189 = vunpack.c.l.b16 %v152
    %v190 = vunpack.c.l.b16 %v153
    %v191 = vunpack.c.l.b16 %v154
    %v192 = vunpack.c.l.b16 %v155
    %v193 = vunpack.c.l.b16 %v156
    %v194 = vunpack.c.l.b16 %v157
    %v195 = vunpack.c.l.b16 %v158
    %v196 = vunpack.c.l.b16 %v159
    %v197 = vunpack.c.l.b16 %v160
    %v198 = vunpack.c.l.b16 %v161
    %v199 = vunpack.c.l.b16 %v162
    %v200 = vunpack.c.l.b16 %v163
    %v201 = vpack.c.b16 %v186, %v185
    %v202 = vpack.c.b16 %v188, %v187
    %v203 = vpack.c.b16 %v190, %v189
    %v204 = vpack.c.b16 %v192, %v191
    %v205 = vpack.c.b16 %v194, %v193
    %v206 = vpack.c.b16 %v196, %v195
    %v207 = vpack.c.b16 %v198, %v197
    %v208 = vpack.c.b16 %v200, %v199
    %217 = vmatprep.subr.bf16.mxu0 0
    %218 = vmatpush1.bf16.msra.mxu0 %v208
    %219 = vmatprep.subr.bf16.mxu0 0
    %220 = vmatpush1.bf16.msra.mxu0 %v207
    %221 = vmatprep.subr.bf16.mxu0 0
    %222 = vmatpush1.bf16.msra.mxu0 %v206
    %223 = vmatprep.subr.bf16.mxu0 0
    %224 = vmatpush1.bf16.msra.mxu0 %v205
    %225 = vmatprep.subr.bf16.mxu0 0
    %226 = vmatpush1.bf16.msra.mxu0 %v204
    %227 = vmatprep.subr.bf16.mxu0 0
    %228 = vmatpush1.bf16.msra.mxu0 %v203
    %229 = vmatprep.subr.bf16.mxu0 0
    %230 = vmatpush1.bf16.msra.mxu0 %v202
    %231 = vmatprep.subr.bf16.mxu0 0
    %232 = vmatpush1.bf16.msra.mxu0 %v201
    %233 = vmatprep.subr.bf16.mxu0 0
    %234 = vmatpush2.bf16.msra.mxu0 0
    %235 = vmatprep.subr.bf16.mxu0 0
    %236 = vmatpush2.bf16.msra.mxu0 0
    %237 = vmatprep.subr.bf16.mxu0 0
    %238 = vmatpush2.bf16.msra.mxu0 0
    %239 = vmatprep.subr.bf16.mxu0 0
    %240 = vmatpush2.bf16.msra.mxu0 0
    %241 = vmatprep.subr.bf16.mxu0 0
    %242 = vmatpush2.bf16.msra.mxu0 0
    %243 = vmatprep.subr.bf16.mxu0 0
    %244 = vmatpush2.bf16.msra.mxu0 0
    %245 = vmatprep.subr.bf16.mxu0 0
    %246 = vmatpush2.bf16.msra.mxu0 0
    %247 = vmatprep.subr.bf16.mxu0 0
    %248 = vmatpush2.bf16.msra.mxu0 0
    %249 = vmatprep.mubr.bf16.mxu0 0
    %250 = vmatmul.mubr.bf16.gmra.mxu0 %v147
    %v251 = vpop.f32.mrf.mxu0
    %v252 = vadd.f32 %v168, %v251
    %v253 = vpop.f32.mrf.mxu0
    %v254 = vpop.f32.mrf.mxu0
    %v255 = vpop.f32.mrf.mxu0
    %256 = vdwg.mxu0
    %257 = vadd.xlane.f32.xlu0 %v252
    %v258 = vpop.xlane.xlu0 %257
    %v259 = vmul.f32 %v258, 0.020833334
    %v260 = vmul.f32 %v252, %v252
    %261 = vadd.xlane.f32.xlu0 %v260
    %v262 = vpop.xlane.xlu0 %261
    %v263 = vmul.f32 %v262, 0.020833334
    %v264 = vmul.f32 %v259, %v259
    %v265 = vsub.f32 %v263, %v264
    %v266 = vmax.f32 %v265, 0.0
    %v267 = vsub.f32 %v252, %v259
    %v268 = vadd.f32 %v266, 1e-05
    %v269 = vrsqrt.pop %v268
    %v270 = vmul.f32 %v267, %v269
    %v271 = vld [vmem:[%s5 + $0x1] sm:$0x1]
    %v272 = vlaneseq
    %v273 = vshrl.u32 %v272, 7
    %v274 = vsub.s32 0, %v273
    %v275 = vrot.slane %v271, %v274
    %v276 = vmul.f32 %v270, %v275
    %v277 = vld [vmem:[%s5 + $0x2] sm:$0x1]
    %v278 = vlaneseq
    %v279 = vshrl.u32 %v278, 7
    %v280 = vsub.s32 0, %v279
    %v281 = vrot.slane %v277, %v280
    %v282 = vadd.f32 %v276, %v281
    %v283 = vmax.f32 %v282, 0.0
    %v284 = vpack.c.bf16 %v283, %v283
    %v285 = vld [vmem:[%s3] sm:$0xf]
    %v286 = vld [vmem:[%s3 + $0x4] sm:$0xf]
    %v287 = vld [vmem:[%s3 + $0x8] sm:$0xf]
    %v288 = vld [vmem:[%s3 + $0xc] sm:$0xf]
    %v289 = vld [vmem:[%s3 + $0x10] sm:$0xf]
    %v290 = vld [vmem:[%s3 + $0x14] sm:$0xf]
    %v291 = vld [vmem:[%s3 + $0x18] sm:$0xf]
    %v292 = vld [vmem:[%s3 + $0x1c] sm:$0xf]
    %v293 = vld [vmem:[%s3 + $0x20] sm:$0xf]
    %v294 = vld [vmem:[%s3 + $0x24] sm:$0xf]
    %v295 = vld [vmem:[%s3 + $0x28] sm:$0xf]
    %v296 = vld [vmem:[%s3 + $0x2c] sm:$0xf]
    %v297 = vld [vmem:[%s3 + $0x30] sm:$0xf]
    %v298 = vld [vmem:[%s3 + $0x34] sm:$0xf]
    %v299 = vld [vmem:[%s3 + $0x38] sm:$0xf]
    %v300 = vld [vmem:[%s3 + $0x3c] sm:$0xf]
    %v301 = vld [vmem:[%s6] sm:$0x1]
    %v303 = vlaneseq
    %v304 = vshrl.u32 %v303, 7
    %v305 = vsub.s32 0, %v304
    %v306 = vrot.slane %v301, %v305
    %v324 = vunpack.c.l.b16 %v285
    %v325 = vunpack.c.l.b16 %v286
    %v326 = vunpack.c.l.b16 %v287
    %v327 = vunpack.c.l.b16 %v288
    %v328 = vunpack.c.l.b16 %v289
    %v329 = vunpack.c.l.b16 %v290
    %v330 = vunpack.c.l.b16 %v291
    %v331 = vunpack.c.l.b16 %v292
    %v332 = vunpack.c.l.b16 %v293
    %v333 = vunpack.c.l.b16 %v294
    %v334 = vunpack.c.l.b16 %v295
    %v335 = vunpack.c.l.b16 %v296
    %v336 = vunpack.c.l.b16 %v297
    %v337 = vunpack.c.l.b16 %v298
    %v338 = vunpack.c.l.b16 %v299
    %v339 = vunpack.c.l.b16 %v300
    %v340 = vpack.c.b16 %v325, %v324
    %v341 = vpack.c.b16 %v327, %v326
    %v342 = vpack.c.b16 %v329, %v328
    %v343 = vpack.c.b16 %v331, %v330
    %v344 = vpack.c.b16 %v333, %v332
    %v345 = vpack.c.b16 %v335, %v334
    %v346 = vpack.c.b16 %v337, %v336
    %v347 = vpack.c.b16 %v339, %v338
    %356 = vmatprep.subr.bf16.mxu0 0
    %357 = vmatpush1.bf16.msra.mxu0 %v347
    %358 = vmatprep.subr.bf16.mxu0 0
    %359 = vmatpush1.bf16.msra.mxu0 %v346
    %360 = vmatprep.subr.bf16.mxu0 0
    %361 = vmatpush1.bf16.msra.mxu0 %v345
    %362 = vmatprep.subr.bf16.mxu0 0
    %363 = vmatpush1.bf16.msra.mxu0 %v344
    %364 = vmatprep.subr.bf16.mxu0 0
    %365 = vmatpush1.bf16.msra.mxu0 %v343
    %366 = vmatprep.subr.bf16.mxu0 0
    %367 = vmatpush1.bf16.msra.mxu0 %v342
    %368 = vmatprep.subr.bf16.mxu0 0
    %369 = vmatpush1.bf16.msra.mxu0 %v341
    %370 = vmatprep.subr.bf16.mxu0 0
    %371 = vmatpush1.bf16.msra.mxu0 %v340
    %372 = vmatprep.subr.bf16.mxu0 0
    %373 = vmatpush2.bf16.msra.mxu0 0
    %374 = vmatprep.subr.bf16.mxu0 0
    %375 = vmatpush2.bf16.msra.mxu0 0
    %376 = vmatprep.subr.bf16.mxu0 0
    %377 = vmatpush2.bf16.msra.mxu0 0
    %378 = vmatprep.subr.bf16.mxu0 0
    %379 = vmatpush2.bf16.msra.mxu0 0
    %380 = vmatprep.subr.bf16.mxu0 0
    %381 = vmatpush2.bf16.msra.mxu0 0
    %382 = vmatprep.subr.bf16.mxu0 0
    %383 = vmatpush2.bf16.msra.mxu0 0
    %384 = vmatprep.subr.bf16.mxu0 0
    %385 = vmatpush2.bf16.msra.mxu0 0
    %386 = vmatprep.subr.bf16.mxu0 0
    %387 = vmatpush2.bf16.msra.mxu0 0
    %388 = vmatprep.mubr.bf16.mxu0 0
    %389 = vmatmul.mubr.bf16.gmra.mxu0 %v284
    %v390 = vpop.f32.mrf.mxu0
    %v391 = vadd.f32 %v306, %v390
    %v392 = vpop.f32.mrf.mxu0
    %v393 = vpop.f32.mrf.mxu0
    %v394 = vpop.f32.mrf.mxu0
    %395 = vdwg.mxu0
    %v396 = vtanh.pop %v391
    %vm397 = vcmask 31744
    %398 = vst.msk [vmem:[%s7] sm:$0xff] %vm397, %v396
    // Predicated region
    $region38: #{ddpg_actor_forward.1} parent=1 // pred_check
      _
    $region39: #{ddpg_actor_forward.1} parent=1 // pred_check_branch
      %400 = sbr.rel (0) target = $region41
    $region40: #{ddpg_actor_forward.1} parent=1 // pred_region
      _
    $region41: #{ddpg_actor_forward.1} parent=1 // pred_fallthru
      _
    // Predicated region
    $region42: #{ddpg_actor_forward.1} parent=1 // pred_check
      _
    $region43: #{ddpg_actor_forward.1} parent=1 // pred_check_branch
      %402 = sbr.rel (0) target = $region45
    $region44: #{ddpg_actor_forward.1} parent=1 // pred_region
      _
    $region45: #{ddpg_actor_forward.1} parent=1 // pred_fallthru
      _
    %403 = vsyncpa [#allocation3], 1
    %404 = vsyncpa [#allocation5], 1

</llo_original>
